<compile_context>
chip_gen: v5e
topology: v5e:2x2
jax: 0.10.0
libtpu: 0.0.40
codegen_flags: <defaults>
</compile_context>

<pallas_src>
import functools

import jax
import jax.numpy as jnp
from jax import lax
from jax.experimental import pallas as pl
from jax.experimental.pallas import tpu as pltpu


def _triplet_loss_kernel(a_ref, p_ref, n_ref, out_ref, acc_ref, *,
                         margin, n_total, block_n, needs_mask):
    i = pl.program_id(1)                        # reduction step over N (innermost)
    last = pl.num_programs(1) - 1

    @pl.when(i == 0)
    def _init():
        acc_ref[...] = jnp.zeros_like(acc_ref)

    a = a_ref[...].astype(jnp.float32)
    p = p_ref[...].astype(jnp.float32)
    n = n_ref[...].astype(jnp.float32)

    # Fused single-pass contribution to (dist_pos - dist_neg).
    dp = (a - p) * (a - p)
    dn = (a - n) * (a - n)
    sq = dp - dn                                # (block_n, block_d)
    tn, db = sq.shape

    def _accumulate(vals):
        if tn % 8 == 0:
            # Steady state: straight VPU adds over (8, block_d) vreg tiles;
            # the single cross-sublane (XLU) reduction is deferred to finalize.
            acc_ref[...] += vals.reshape(tn // 8, 8, db).sum(axis=0)
        else:
            # Single whole-array tile whose row count is not a multiple of 8.
            acc_ref[0:1, :] += jnp.sum(vals, axis=0, keepdims=True)

    if needs_mask:
        # Only the final N tile is padded: keep the steady state unmasked and
        # build the iota/compare/where only on the last step.
        @pl.when(i < last)
        def _steady():
            _accumulate(sq)

        @pl.when(i == last)
        def _ragged_last():
            row = i * block_n + lax.broadcasted_iota(jnp.int32, (tn, 1), 0)
            _accumulate(jnp.where(row < n_total, sq, 0.0))
    else:
        _accumulate(sq)

    @pl.when(i == last)
    def _finalize():
        delta = jnp.sum(acc_ref[...], axis=0)               # (block_d,) — one XLU reduce
        losses = jnp.maximum(delta + margin, 0.0)           # relu
        out_ref[0, 0] = jnp.sum(losses)                     # per-D-block partial (SMEM)


def _hw_params():
    """Generation-aware tile-payload targets / VMEM capacity / TC count."""
    try:
        kind = jax.devices()[0].device_kind.lower()
    except Exception:
        kind = ""
    if "v2" in kind or "v3" in kind:
        return {"target_block_bytes": 1 << 20, "physical_vmem": 16 << 20, "num_tc": 1}
    if "v5e" in kind or "v5 lite" in kind or "v5lite" in kind:
        return {"target_block_bytes": 2 << 20, "physical_vmem": 128 << 20, "num_tc": 1}
    if "v6" in kind:
        return {"target_block_bytes": 4 << 20, "physical_vmem": 128 << 20, "num_tc": 1}
    if "v7" in kind or "7x" in kind:
        return {"target_block_bytes": 5 << 20, "physical_vmem": 64 << 20, "num_tc": 2}
    if "v4" in kind or "v5p" in kind or "v5" in kind:
        return {"target_block_bytes": 4 << 20, "physical_vmem": 128 << 20, "num_tc": 2}
    # Unknown chip: conservative VMEM assumption, single TensorCore.
    return {"target_block_bytes": 4 << 20, "physical_vmem": 64 << 20, "num_tc": 1}


def _sublane_align(dtype):
    """Sublane tile for the dtype: 8 (f32), 16 (bf16), 32 (int8/fp8)."""
    return max(8, 32 // max(jnp.dtype(dtype).itemsize, 1))


def _choose_block_n(n, block_d, itemsize, align, target_block_bytes, physical_vmem,
                    max_rows=32768):
    """Row tile sized by target DMA payload per step, capped by physical VMEM."""
    # Per-row VMEM cost: 3 inputs x 2 pipeline buffers + ~4 live f32 temporaries
    # (upcasts of a/p/n plus dp/dn/sq, conservatively).
    per_row = 6 * block_d * itemsize + 4 * block_d * 4
    vmem_cap = max(physical_vmem - (12 << 20), 2 << 20)
    rows_vmem = vmem_cap // max(per_row, 1)
    rows_target = target_block_bytes // max(block_d * itemsize, 1)
    rows = min(max_rows, rows_vmem, rows_target)
    rows = max(align, (rows // align) * align)
    if rows >= n:
        return n                        # single full-array tile (block == array dims)
    # Balance the last tile so it is not nearly empty.
    num_steps = -(-n // rows)
    balanced = -(-n // num_steps)
    balanced = -(-balanced // align) * align
    return min(balanced, rows)


def triplet_loss(anchor, positive, negative, margin, size_average=True,
                 block_n=None, num_d_blocks=None):
    """Pallas TPU implementation of TripletLoss.forward. Returns a scalar f32."""
    assert anchor.shape == positive.shape == negative.shape
    assert anchor.ndim == 2, "expects (N, D) embeddings, matching the PyTorch use"
    n, d = anchor.shape
    itemsize = jnp.dtype(anchor.dtype).itemsize
    align = _sublane_align(anchor.dtype)
    hw = _hw_params()

    # --- D tiling: parallel axis so both TensorCores stream data on 2-TC chips. ---
    if num_d_blocks is None:
        num_d_blocks = hw["num_tc"]
    num_d_blocks = max(int(num_d_blocks), 1)
    if d % num_d_blocks != 0 or (d // num_d_blocks) % 128 != 0:
        num_d_blocks = 1
    block_d = d // num_d_blocks

    # --- N tiling (reduction axis, innermost). ---
    if block_n is None:
        block_n = _choose_block_n(n, block_d, itemsize, align,
                                  hw["target_block_bytes"], hw["physical_vmem"])
    block_n = min(int(block_n), n)
    if block_n < n:
        block_n = max(align, (block_n // align) * align)
    num_n_steps = pl.cdiv(n, block_n)
    needs_mask = (num_n_steps * block_n) != n

    # --- Explicit scoped-VMEM limit: buffers + f32 upcast temporaries + acc. ---
    block_in_bytes = block_n * block_d * itemsize
    block_f32_bytes = block_n * block_d * 4
    vmem_needed = 6 * block_in_bytes + 4 * block_f32_bytes + 8 * block_d * 4 + (2 << 20)
    vmem_limit = int(min(max(vmem_needed, 32 << 20), hw["physical_vmem"] - (4 << 20)))

    kernel = functools.partial(
        _triplet_loss_kernel,
        margin=float(margin),
        n_total=n,
        block_n=block_n,
        needs_mask=needs_mask,
    )

    in_spec = pl.BlockSpec((block_n, block_d), lambda j, i: (i, j))
    # Per-D-block scalar partial, written once per j in the finalize branch.
    out_spec = pl.BlockSpec((1, 1), lambda j, i: (j, 0),
                            memory_space=pltpu.MemorySpace.SMEM)

    cost = pl.CostEstimate(
        flops=5 * n * d,
        transcendentals=0,
        bytes_accessed=3 * n * d * itemsize + num_d_blocks * 4,
    )

    partials = pl.pallas_call(
        kernel,
        out_shape=jax.ShapeDtypeStruct((num_d_blocks, 1), jnp.float32),
        grid_spec=pltpu.PrefetchScalarGridSpec(
            num_scalar_prefetch=0,
            grid=(num_d_blocks, num_n_steps),
            in_specs=[in_spec, in_spec, in_spec],
            out_specs=out_spec,
            scratch_shapes=[pltpu.VMEM((8, block_d), jnp.float32)],
        ),
        compiler_params=pltpu.CompilerParams(
            dimension_semantics=("parallel", "arbitrary"),
            vmem_limit_bytes=vmem_limit,
        ),
        cost_estimate=cost,
    )(anchor, positive, negative)

    total = jnp.sum(partials)
    # Divide by the GLOBAL D exactly once (partials are per-D-block relu-sums).
    return total / d if size_average else total


def _reference(anchor, positive, negative, margin, size_average=True):
    a = anchor.astype(jnp.float32)
    p = positive.astype(jnp.float32)
    n = negative.astype(jnp.float32)
    dp = jnp.sum((a - p) ** 2, axis=0)
    dn = jnp.sum((a - n) ** 2, axis=0)
    losses = jax.nn.relu(dp - dn + margin)
    return jnp.mean(losses) if size_average else jnp.sum(losses)


if __name__ == "__main__":
    key = jax.random.PRNGKey(0)
    margin = 1.0

    # Case 1: N divisible by the forced tile — exercises grid + accumulator.
    N, D = 64, 256
    k_a, k_p, k_n, key = jax.random.split(key, 4)
    anchor = jax.random.normal(k_a, (N, D), dtype=jnp.float32)
    positive = jax.random.normal(k_p, (N, D), dtype=jnp.float32)
    negative = jax.random.normal(k_n, (N, D), dtype=jnp.float32)

    ref_mean = _reference(anchor, positive, negative, margin, size_average=True)
    ref_sum = _reference(anchor, positive, negative, margin, size_average=False)

    out_auto = jax.block_until_ready(
        triplet_loss(anchor, positive, negative, margin, size_average=True))
    out_tiled_mean = jax.block_until_ready(
        triplet_loss(anchor, positive, negative, margin, size_average=True, block_n=16))
    out_tiled_sum = jax.block_until_ready(
        triplet_loss(anchor, positive, negative, margin, size_average=False, block_n=16))
    assert jnp.allclose(out_auto, ref_mean, rtol=1e-5, atol=1e-5), (out_auto, ref_mean)
    assert jnp.allclose(out_tiled_mean, ref_mean, rtol=1e-5, atol=1e-5), (out_tiled_mean, ref_mean)
    assert jnp.allclose(out_tiled_sum, ref_sum, rtol=1e-5, atol=1e-5), (out_tiled_sum, ref_sum)

    # Case 2: forced two D blocks — exercises the parallel-D partial-sum path
    # (the one used automatically on 2-TC chips such as v7x).
    out_2d_mean = jax.block_until_ready(
        triplet_loss(anchor, positive, negative, margin, size_average=True,
                     block_n=16, num_d_blocks=2))
    out_2d_sum = jax.block_until_ready(
        triplet_loss(anchor, positive, negative, margin, size_average=False,
                     num_d_blocks=2))
    assert jnp.allclose(out_2d_mean, ref_mean, rtol=1e-5, atol=1e-5), (out_2d_mean, ref_mean)
    assert jnp.allclose(out_2d_sum, ref_sum, rtol=1e-5, atol=1e-5), (out_2d_sum, ref_sum)

    # Case 3: ragged N (masked, padded last tile).
    N2 = 50
    k_a, k_p, k_n, key = jax.random.split(key, 4)
    anchor2 = jax.random.normal(k_a, (N2, D), dtype=jnp.float32)
    positive2 = jax.random.normal(k_p, (N2, D), dtype=jnp.float32)
    negative2 = jax.random.normal(k_n, (N2, D), dtype=jnp.float32)
    ref2_mean = _reference(anchor2, positive2, negative2, margin, size_average=True)
    ref2_sum = _reference(anchor2, positive2, negative2, margin, size_average=False)
    out2_mean = jax.block_until_ready(
        triplet_loss(anchor2, positive2, negative2, margin, size_average=True, block_n=16))
    out2_sum = jax.block_until_ready(
        triplet_loss(anchor2, positive2, negative2, margin, size_average=False, block_n=16))
    assert jnp.allclose(out2_mean, ref2_mean, rtol=1e-5, atol=1e-5), (out2_mean, ref2_mean)
    assert jnp.allclose(out2_sum, ref2_sum, rtol=1e-5, atol=1e-5), (out2_sum, ref2_sum)

    # Case 4: bf16 inputs — 16-row sublane alignment, f32 accumulation in-kernel.
    anchor_b = anchor.astype(jnp.bfloat16)
    positive_b = positive.astype(jnp.bfloat16)
    negative_b = negative.astype(jnp.bfloat16)
    ref_b = _reference(anchor_b, positive_b, negative_b, margin, size_average=True)
    out_b = jax.block_until_ready(
        triplet_loss(anchor_b, positive_b, negative_b, margin, size_average=True, block_n=16))
    assert jnp.allclose(out_b, ref_b, rtol=1e-3, atol=1e-3), (out_b, ref_b)

    print("KERNEL_OK")
</pallas_src>

<mosaic_0001>
module attributes {stable_mosaic.version = 11 : i64} {
  func.func @_triplet_loss_kernel(%arg0: i32, %arg1: i32, %arg2: memref<64x256xf32, #tpu.memory_space<vmem>>, %arg3: memref<64x256xf32, #tpu.memory_space<vmem>>, %arg4: memref<64x256xf32, #tpu.memory_space<vmem>>, %arg5: memref<1x1xf32, #tpu.memory_space<smem>>, %arg6: memref<8x256xf32, #tpu.memory_space<vmem>>) attributes {dimension_semantics = [#tpu.dimension_semantics<parallel>, #tpu.dimension_semantics<arbitrary>], iteration_bounds = array<i64: 1, 1>, scalar_prefetch = 0 : i64, scratch_operands = 1 : i64, tpu.core_type = #tpu.core_type<tc>, window_params = [{transform_indices = @transform_0, window_bounds = array<i64: 64, 256>}, {transform_indices = @transform_1, window_bounds = array<i64: 64, 256>}, {transform_indices = @transform_2, window_bounds = array<i64: 64, 256>}, {transform_indices = @transform_3, window_bounds = array<i64: 1, 1>}]} {
    %c0_i32 = arith.constant 0 : i32
    %0 = arith.cmpi eq, %arg1, %c0_i32 : i32
    %1 = arith.extui %0 : i1 to i32
    %c0_i32_0 = arith.constant 0 : i32
    %2 = arith.cmpi ne, %1, %c0_i32_0 : i32
    scf.if %2 {
      %cst_12 = arith.constant 0.000000e+00 : f32
      %21 = vector.broadcast %cst_12 : f32 to vector<8x256xf32>
      %c0_13 = arith.constant 0 : index
      %c0_14 = arith.constant 0 : index
      %22 = vector.load %arg6[%c0_13, %c0_14] : memref<8x256xf32, #tpu.memory_space<vmem>>, vector<8x256xf32>
      tpu.vector_store %arg6[%c0_13, %c0_14], %21 {strides = array<i32>} : memref<8x256xf32, #tpu.memory_space<vmem>>, vector<8x256xf32>,
    } else {
    }
    %c0 = arith.constant 0 : index
    %c0_1 = arith.constant 0 : index
    %3 = vector.load %arg2[%c0, %c0_1] : memref<64x256xf32, #tpu.memory_space<vmem>>, vector<64x256xf32>
    %c0_2 = arith.constant 0 : index
    %c0_3 = arith.constant 0 : index
    %4 = vector.load %arg3[%c0_2, %c0_3] : memref<64x256xf32, #tpu.memory_space<vmem>>, vector<64x256xf32>
    %c0_4 = arith.constant 0 : index
    %c0_5 = arith.constant 0 : index
    %5 = vector.load %arg4[%c0_4, %c0_5] : memref<64x256xf32, #tpu.memory_space<vmem>>, vector<64x256xf32>
    %6 = arith.subf %3, %4 : vector<64x256xf32>
    %7 = arith.subf %3, %4 : vector<64x256xf32>
    %8 = arith.mulf %6, %7 : vector<64x256xf32>
    %9 = arith.subf %3, %5 : vector<64x256xf32>
    %10 = arith.subf %3, %5 : vector<64x256xf32>
    %11 = arith.mulf %9, %10 : vector<64x256xf32>
    %12 = arith.subf %8, %11 : vector<64x256xf32>
    %c0_6 = arith.constant 0 : index
    %c0_7 = arith.constant 0 : index
    %13 = vector.load %arg6[%c0_6, %c0_7] : memref<8x256xf32, #tpu.memory_space<vmem>>, vector<8x256xf32>
    %14 = vector.shape_cast %12 : vector<64x256xf32> to vector<8x8x256xf32>
    %cst = arith.constant dense<0.000000e+00> : vector<8x256xf32>
    %15 = vector.multi_reduction <add>, %14, %cst [0] : vector<8x8x256xf32> to vector<8x256xf32>
    %16 = arith.addf %13, %15 : vector<8x256xf32>
    %c0_8 = arith.constant 0 : index
    %c0_9 = arith.constant 0 : index
    %17 = vector.load %arg6[%c0_8, %c0_9] : memref<8x256xf32, #tpu.memory_space<vmem>>, vector<8x256xf32>
    tpu.vector_store %arg6[%c0_8, %c0_9], %16 {strides = array<i32>} : memref<8x256xf32, #tpu.memory_space<vmem>>, vector<8x256xf32>,
    %c0_i32_10 = arith.constant 0 : i32
    %18 = arith.cmpi eq, %arg1, %c0_i32_10 : i32
    %19 = arith.extui %18 : i1 to i32
    %c0_i32_11 = arith.constant 0 : i32
    %20 = arith.cmpi ne, %19, %c0_i32_11 : i32
    scf.if %20 {
      %c0_12 = arith.constant 0 : index
      %c0_13 = arith.constant 0 : index
      %21 = vector.load %arg6[%c0_12, %c0_13] : memref<8x256xf32, #tpu.memory_space<vmem>>, vector<8x256xf32>
      %cst_14 = arith.constant dense<0.000000e+00> : vector<256xf32>
      %22 = vector.multi_reduction <add>, %21, %cst_14 [0] : vector<8x256xf32> to vector<256xf32>
      %cst_15 = arith.constant 1.000000e+00 : f32
      %23 = vector.broadcast %cst_15 : f32 to vector<256xf32>
      %24 = arith.addf %22, %23 : vector<256xf32>
      %cst_16 = arith.constant 0.000000e+00 : f32
      %25 = vector.broadcast %cst_16 : f32 to vector<256xf32>
      %26 = arith.maximumf %24, %25 : vector<256xf32>
      %27 = vector.shape_cast %26 : vector<256xf32> to vector<1x256xf32>
      %cst_17 = arith.constant dense<0.000000e+00> : vector<1xf32>
      %28 = vector.multi_reduction <add>, %27, %cst_17 [1] : vector<1x256xf32> to vector<1xf32>
      %29 = vector.shape_cast %28 : vector<1xf32> to vector<1x1xf32>
      %30 = vector.extract %29[0, 0] : f32 from vector<1x1xf32>
      %c0_18 = arith.constant 0 : index
      %c0_19 = arith.constant 0 : index
      %31 = memref.load %arg5[%c0_18, %c0_19] : memref<1x1xf32, #tpu.memory_space<smem>>
      memref.store %30, %arg5[%c0_18, %c0_19] : memref<1x1xf32, #tpu.memory_space<smem>>
    } else {
    }
    return
  }
  func.func @transform_0(%arg0: i32, %arg1: i32) -> (i32, i32) {
    %c0_i32 = arith.constant 0 : i32
    return %arg1, %arg0 : i32, i32
  }
  func.func @transform_1(%arg0: i32, %arg1: i32) -> (i32, i32) {
    %c0_i32 = arith.constant 0 : i32
    return %arg1, %arg0 : i32, i32
  }
  func.func @transform_2(%arg0: i32, %arg1: i32) -> (i32, i32) {
    %c0_i32 = arith.constant 0 : i32
    return %arg1, %arg0 : i32, i32
  }
  func.func @transform_3(%arg0: i32, %arg1: i32) -> (i32, i32) {
    %c0_i32 = arith.constant 0 : i32
    %c0_i32_0 = arith.constant 0 : i32
    return %arg0, %c0_i32 : i32, i32
  }
}

</mosaic_0001>

<llo_original>
// kernel: tpu_custom_call.1
$region0: #{tpu_custom_call.1}
  #allocation0 [shape = 'u32[]', space=smem, size = 0x4, offset = 0x4, fixed_abs, tag = 'smem constant byte address 0x4 - core index']
  #allocation1 [shape = 'u32[72,128]{1,0:T(1,128)}', space=vmem, size = 0x9000, scoped, tag = 'internal scratch']
  #allocation2 [shape = 'f32[8,256]{1,0:T(8,128)}', space=vmem, size = 0x2000, scoped, tag = 'scratch operand']
  %s0 = inlined_call_operand.hbm [shape: f32[64,256], index: 0, kind: input, shape index: {}]
  %s1 = inlined_call_operand.hbm [shape: f32[64,256], index: 1, kind: input, shape index: {}]
  %s2 = inlined_call_operand.hbm [shape: f32[64,256], index: 2, kind: input, shape index: {}]
  %s3 = inlined_call_operand.hbm [shape: f32[1,1], index: 3, kind: output, shape index: {}]
  %s4 = sld [smem:[#allocation0]]
  $region42: #{tpu_custom_call.1} parent=0
    _
  %s6 = ssub.s32 1, %s4
  %s7 = scalar_select 0, %s6, %s4
  $region1: #{tpu_custom_call.1} parent=0
    #allocation3 [shape = 'u8[65536]{0}', space=vmem, size = 0x10000, scoped, tag = 'input window, operand 0, single buffered']
    #allocation4 [shape = 's32[1]{0}', space=sflag, size = 0x4, scoped, tag = 'scoped memory for tpu_custom_call.1']
    #allocation5 [shape = 's32[1]{0}', space=sflag, size = 0x4, scoped, tag = 'scoped memory for tpu_custom_call.1']
    #allocation6 [shape = 'u8[65536]{0}', space=vmem, size = 0x10000, scoped, tag = 'input window, operand 1, single buffered']
    #allocation7 [shape = 's32[1]{0}', space=sflag, size = 0x4, scoped, tag = 'scoped memory for tpu_custom_call.1']
    #allocation8 [shape = 'u8[65536]{0}', space=vmem, size = 0x10000, scoped, tag = 'input window, operand 2, single buffered']
    #allocation9 [shape = 'u8[512]{0}', space=smem, size = 0x200, scoped, tag = 'output window, operand 0, single buffered']
    %8 = vsyncpa [#allocation4], 0
    %9 = vsyncpa [#allocation7], 0
    %10 = vsyncpa [#allocation5], 0
    // Predicated region
    $region2: #{tpu_custom_call.1} parent=1 // pred_check
      _
    $region3: #{tpu_custom_call.1} parent=1 // pred_check_branch
      %12 = sbr.rel (0) target = $region5
    $region4: #{tpu_custom_call.1} parent=1 // pred_region
      %14 = vsyncadd [#allocation4], 0
      %s15 = sshll.u32 %s0, 4
      %s16 = int_to_ptr.hbm [resolvable:$true] %s15
      %s17 = sshll.u32 [#allocation3], 4
      %s18 = int_to_ptr.vmem [resolvable:$true] %s17
      %23 = dma.hbm_to_vmem [thread:$0]  %s16, 2048, %s18, [#allocation4], 256, 256, 16
    $region5: #{tpu_custom_call.1} parent=1 // pred_fallthru
      _
    // Predicated region
    $region6: #{tpu_custom_call.1} parent=1 // pred_check
      _
    $region7: #{tpu_custom_call.1} parent=1 // pred_check_branch
      %25 = sbr.rel (0) target = $region9
    $region8: #{tpu_custom_call.1} parent=1 // pred_region
      %27 = vsyncadd [#allocation7], 0
      %s28 = sshll.u32 %s1, 4
      %s29 = int_to_ptr.hbm [resolvable:$true] %s28
      %s30 = sshll.u32 [#allocation6], 4
      %s31 = int_to_ptr.vmem [resolvable:$true] %s30
      %36 = dma.hbm_to_vmem [thread:$0]  %s29, 2048, %s31, [#allocation7], 256, 256, 16
    $region9: #{tpu_custom_call.1} parent=1 // pred_fallthru
      _
    // Predicated region
    $region10: #{tpu_custom_call.1} parent=1 // pred_check
      _
    $region11: #{tpu_custom_call.1} parent=1 // pred_check_branch
      %38 = sbr.rel (0) target = $region13
    $region12: #{tpu_custom_call.1} parent=1 // pred_region
      %40 = vsyncadd [#allocation7], 0
      %s41 = sshll.u32 %s2, 4
      %s42 = int_to_ptr.hbm [resolvable:$true] %s41
      %s43 = sshll.u32 [#allocation8], 4
      %s44 = int_to_ptr.vmem [resolvable:$true] %s43
      %49 = dma.hbm_to_vmem [thread:$0]  %s42, 2048, %s44, [#allocation7], 256, 256, 16
    $region13: #{tpu_custom_call.1} parent=1 // pred_fallthru
      _
    // Predicated region
    $region14: #{tpu_custom_call.1} parent=1 // pred_check
      _
    $region15: #{tpu_custom_call.1} parent=1 // pred_check_branch
      %51 = sbr.rel (0) target = $region17
    $region16: #{tpu_custom_call.1} parent=1 // pred_region
      %53 = dma.done [#allocation4], 2048
    $region17: #{tpu_custom_call.1} parent=1 // pred_fallthru
      _
    // Predicated region
    $region18: #{tpu_custom_call.1} parent=1 // pred_check
      _
    $region19: #{tpu_custom_call.1} parent=1 // pred_check_branch
      %55 = sbr.rel (0) target = $region21
    $region20: #{tpu_custom_call.1} parent=1 // pred_region
      %57 = dma.done [#allocation7], 2048
    $region21: #{tpu_custom_call.1} parent=1 // pred_fallthru
      _
    // Predicated region
    $region22: #{tpu_custom_call.1} parent=1 // pred_check
      _
    $region23: #{tpu_custom_call.1} parent=1 // pred_check_branch
      %59 = sbr.rel (0) target = $region25
    $region24: #{tpu_custom_call.1} parent=1 // pred_region
      %61 = dma.done [#allocation7], 2048
    $region25: #{tpu_custom_call.1} parent=1 // pred_fallthru
      _
    %p62 = scmp.eq.s32.totalorder 0, 0
    // Predicated region
    $region26: #{tpu_custom_call.1} parent=1 // pred_check
      %p63 = pneg %p62
    $region27: #{tpu_custom_call.1} parent=1 // pred_check_branch
      %65 = sbr.rel (%p63) target = $region29
    $region28: #{tpu_custom_call.1} parent=1 // pred_region
      %66 = vst [vmem:[#allocation2] sm:$0xff] 0.0
      %67 = vst [vmem:[#allocation2 + $0x8] sm:$0xff] 0.0
    $region29: #{tpu_custom_call.1} parent=1 // pred_fallthru
      _
    %v68 = vld [vmem:[#allocation3] sm:$0xff]
    %v69 = vld [vmem:[#allocation3 + $0x8] sm:$0xff]
    %v70 = vld [vmem:[#allocation3 + $0x10] sm:$0xff]
    %v71 = vld [vmem:[#allocation3 + $0x18] sm:$0xff]
    %v72 = vld [vmem:[#allocation3 + $0x20] sm:$0xff]
    %v73 = vld [vmem:[#allocation3 + $0x28] sm:$0xff]
    %v74 = vld [vmem:[#allocation3 + $0x30] sm:$0xff]
    %v75 = vld [vmem:[#allocation3 + $0x38] sm:$0xff]
    %v76 = vld [vmem:[#allocation3 + $0x40] sm:$0xff]
    %v77 = vld [vmem:[#allocation3 + $0x48] sm:$0xff]
    %v78 = vld [vmem:[#allocation3 + $0x50] sm:$0xff]
    %v79 = vld [vmem:[#allocation3 + $0x58] sm:$0xff]
    %v80 = vld [vmem:[#allocation3 + $0x60] sm:$0xff]
    %v81 = vld [vmem:[#allocation3 + $0x68] sm:$0xff]
    %v82 = vld [vmem:[#allocation3 + $0x70] sm:$0xff]
    %v83 = vld [vmem:[#allocation3 + $0x78] sm:$0xff]
    %v84 = vld [vmem:[#allocation6] sm:$0xff]
    %v85 = vld [vmem:[#allocation6 + $0x8] sm:$0xff]
    %v86 = vld [vmem:[#allocation6 + $0x10] sm:$0xff]
    %v87 = vld [vmem:[#allocation6 + $0x18] sm:$0xff]
    %v88 = vld [vmem:[#allocation6 + $0x20] sm:$0xff]
    %v89 = vld [vmem:[#allocation6 + $0x28] sm:$0xff]
    %v90 = vld [vmem:[#allocation6 + $0x30] sm:$0xff]
    %v91 = vld [vmem:[#allocation6 + $0x38] sm:$0xff]
    %v92 = vld [vmem:[#allocation6 + $0x40] sm:$0xff]
    %v93 = vld [vmem:[#allocation6 + $0x48] sm:$0xff]
    %v94 = vld [vmem:[#allocation6 + $0x50] sm:$0xff]
    %v95 = vld [vmem:[#allocation6 + $0x58] sm:$0xff]
    %v96 = vld [vmem:[#allocation6 + $0x60] sm:$0xff]
    %v97 = vld [vmem:[#allocation6 + $0x68] sm:$0xff]
    %v98 = vld [vmem:[#allocation6 + $0x70] sm:$0xff]
    %v99 = vld [vmem:[#allocation6 + $0x78] sm:$0xff]
    %v100 = vld [vmem:[#allocation8] sm:$0xff]
    %v101 = vld [vmem:[#allocation8 + $0x8] sm:$0xff]
    %v102 = vld [vmem:[#allocation8 + $0x10] sm:$0xff]
    %v103 = vld [vmem:[#allocation8 + $0x18] sm:$0xff]
    %v104 = vld [vmem:[#allocation8 + $0x20] sm:$0xff]
    %v105 = vld [vmem:[#allocation8 + $0x28] sm:$0xff]
    %v106 = vld [vmem:[#allocation8 + $0x30] sm:$0xff]
    %v107 = vld [vmem:[#allocation8 + $0x38] sm:$0xff]
    %v108 = vld [vmem:[#allocation8 + $0x40] sm:$0xff]
    %v109 = vld [vmem:[#allocation8 + $0x48] sm:$0xff]
    %v110 = vld [vmem:[#allocation8 + $0x50] sm:$0xff]
    %v111 = vld [vmem:[#allocation8 + $0x58] sm:$0xff]
    %v112 = vld [vmem:[#allocation8 + $0x60] sm:$0xff]
    %v113 = vld [vmem:[#allocation8 + $0x68] sm:$0xff]
    %v114 = vld [vmem:[#allocation8 + $0x70] sm:$0xff]
    %v115 = vld [vmem:[#allocation8 + $0x78] sm:$0xff]
    %v116 = vsub.f32 %v68, %v84
    %v117 = vsub.f32 %v69, %v85
    %v118 = vsub.f32 %v70, %v86
    %v119 = vsub.f32 %v71, %v87
    %v120 = vsub.f32 %v72, %v88
    %v121 = vsub.f32 %v73, %v89
    %v122 = vsub.f32 %v74, %v90
    %v123 = vsub.f32 %v75, %v91
    %v124 = vsub.f32 %v76, %v92
    %v125 = vsub.f32 %v77, %v93
    %v126 = vsub.f32 %v78, %v94
    %v127 = vsub.f32 %v79, %v95
    %v128 = vsub.f32 %v80, %v96
    %v129 = vsub.f32 %v81, %v97
    %v130 = vsub.f32 %v82, %v98
    %v131 = vsub.f32 %v83, %v99
    %v132 = vmul.f32 %v116, %v116
    %v133 = vmul.f32 %v117, %v117
    %v134 = vmul.f32 %v118, %v118
    %v135 = vmul.f32 %v119, %v119
    %v136 = vmul.f32 %v120, %v120
    %v137 = vmul.f32 %v121, %v121
    %v138 = vmul.f32 %v122, %v122
    %v139 = vmul.f32 %v123, %v123
    %v140 = vmul.f32 %v124, %v124
    %v141 = vmul.f32 %v125, %v125
    %v142 = vmul.f32 %v126, %v126
    %v143 = vmul.f32 %v127, %v127
    %v144 = vmul.f32 %v128, %v128
    %v145 = vmul.f32 %v129, %v129
    %v146 = vmul.f32 %v130, %v130
    %v147 = vmul.f32 %v131, %v131
    %v148 = vsub.f32 %v68, %v100
    %v149 = vsub.f32 %v69, %v101
    %v150 = vsub.f32 %v70, %v102
    %v151 = vsub.f32 %v71, %v103
    %v152 = vsub.f32 %v72, %v104
    %v153 = vsub.f32 %v73, %v105
    %v154 = vsub.f32 %v74, %v106
    %v155 = vsub.f32 %v75, %v107
    %v156 = vsub.f32 %v76, %v108
    %v157 = vsub.f32 %v77, %v109
    %v158 = vsub.f32 %v78, %v110
    %v159 = vsub.f32 %v79, %v111
    %v160 = vsub.f32 %v80, %v112
    %v161 = vsub.f32 %v81, %v113
    %v162 = vsub.f32 %v82, %v114
    %v163 = vsub.f32 %v83, %v115
    %v164 = vmul.f32 %v148, %v148
    %v165 = vmul.f32 %v149, %v149
    %v166 = vmul.f32 %v150, %v150
    %v167 = vmul.f32 %v151, %v151
    %v168 = vmul.f32 %v152, %v152
    %v169 = vmul.f32 %v153, %v153
    %v170 = vmul.f32 %v154, %v154
    %v171 = vmul.f32 %v155, %v155
    %v172 = vmul.f32 %v156, %v156
    %v173 = vmul.f32 %v157, %v157
    %v174 = vmul.f32 %v158, %v158
    %v175 = vmul.f32 %v159, %v159
    %v176 = vmul.f32 %v160, %v160
    %v177 = vmul.f32 %v161, %v161
    %v178 = vmul.f32 %v162, %v162
    %v179 = vmul.f32 %v163, %v163
    %v180 = vsub.f32 %v132, %v164
    %v181 = vsub.f32 %v133, %v165
    %v182 = vsub.f32 %v134, %v166
    %v183 = vsub.f32 %v135, %v167
    %v184 = vsub.f32 %v136, %v168
    %v185 = vsub.f32 %v137, %v169
    %v186 = vsub.f32 %v138, %v170
    %v187 = vsub.f32 %v139, %v171
    %v188 = vsub.f32 %v140, %v172
    %v189 = vsub.f32 %v141, %v173
    %v190 = vsub.f32 %v142, %v174
    %v191 = vsub.f32 %v143, %v175
    %v192 = vsub.f32 %v144, %v176
    %v193 = vsub.f32 %v145, %v177
    %v194 = vsub.f32 %v146, %v178
    %v195 = vsub.f32 %v147, %v179
    %v196 = vld [vmem:[#allocation2] sm:$0xff]
    %v197 = vld [vmem:[#allocation2 + $0x8] sm:$0xff]
    %v198 = vadd.f32 %v180, %v182
    %v199 = vadd.f32 %v198, %v184
    %v200 = vadd.f32 %v199, %v186
    %v201 = vadd.f32 %v200, %v188
    %v202 = vadd.f32 %v201, %v190
    %v203 = vadd.f32 %v202, %v192
    %v204 = vadd.f32 %v203, %v194
    %v205 = vadd.f32 %v181, %v183
    %v206 = vadd.f32 %v205, %v185
    %v207 = vadd.f32 %v206, %v187
    %v208 = vadd.f32 %v207, %v189
    %v209 = vadd.f32 %v208, %v191
    %v210 = vadd.f32 %v209, %v193
    %v211 = vadd.f32 %v210, %v195
    %v212 = vadd.f32 %v196, %v204
    %v213 = vadd.f32 %v197, %v211
    %214 = vst [vmem:[#allocation2] sm:$0xff] %v212
    %215 = vst [vmem:[#allocation2 + $0x8] sm:$0xff] %v213
    // Predicated region
    $region30: #{tpu_custom_call.1} parent=1 // pred_check
      %p216 = pneg %p62
    $region31: #{tpu_custom_call.1} parent=1 // pred_check_branch
      %218 = sbr.rel (%p216) target = $region33
    $region32: #{tpu_custom_call.1} parent=1 // pred_region
      %v219 = vld [vmem:[#allocation2] sm:$0xff]
      %v220 = vld [vmem:[#allocation2 + $0x8] sm:$0xff]
      %v221 = vrot.slane %v219, 4
      %v222 = vadd.f32 %v219, %v221
      %v223 = vrot.slane %v222, 2
      %v224 = vadd.f32 %v222, %v223
      %v225 = vrot.slane %v224, 1
      %v226 = vadd.f32 %v224, %v225
      %v227 = vrot.slane %v220, 4
      %v228 = vadd.f32 %v220, %v227
      %v229 = vrot.slane %v228, 2
      %v230 = vadd.f32 %v228, %v229
      %v231 = vrot.slane %v230, 1
      %v232 = vadd.f32 %v230, %v231
      %v233 = vadd.f32 %v226, 1.0
      %v234 = vadd.f32 %v232, 1.0
      %v235 = vmax.f32 %v233, 0.0
      %v236 = vmax.f32 %v234, 0.0
      %v237 = vadd.f32 %v235, %v236
      %238 = vadd.xlane.f32.xlu0 %v237
      %v239 = vpop.xlane.xlu0 %238
      %s240 = vtos %v239
      %s241 = scalar_lea.smem [#allocation9], 0
      %242 = sst [smem:[%s241]] %s240
    $region33: #{tpu_custom_call.1} parent=1 // pred_fallthru
      _
    // Predicated region
    $region34: #{tpu_custom_call.1} parent=1 // pred_check
      _
    $region35: #{tpu_custom_call.1} parent=1 // pred_check_branch
      %244 = sbr.rel (0) target = $region37
    $region36: #{tpu_custom_call.1} parent=1 // pred_region
      %246 = vsyncadd [#allocation5], 0
      %s248 = sshll.u32 %s3, 4
      %s249 = int_to_ptr.hbm [resolvable:$true] %s248
      %251 = dma.smem_to_hbm [#allocation9], 16, %s249, [#allocation5]
    $region37: #{tpu_custom_call.1} parent=1 // pred_fallthru
      _
    // Predicated region
    $region38: #{tpu_custom_call.1} parent=1 // pred_check
      _
    $region39: #{tpu_custom_call.1} parent=1 // pred_check_branch
      %253 = sbr.rel (0) target = $region41
    $region40: #{tpu_custom_call.1} parent=1 // pred_region
      %255 = dma.done [#allocation5], 16
    $region41: #{tpu_custom_call.1} parent=1 // pred_fallthru
      _
    %256 = sfence
    %257 = vsyncpa [#allocation4], 1
    %258 = vsyncpa [#allocation7], 1
    %259 = vsyncpa [#allocation5], 1

</llo_original>
